<compile_context>
chip_gen: v7x
topology: tpu7x:2x2x1
jax: 0.10.0
libtpu: 0.0.40
codegen_flags: <defaults>
</compile_context>

<pallas_src>
import functools
import math

import jax
import jax.numpy as jnp
from jax import lax
from jax.experimental import pallas as pl
from jax.experimental.pallas import tpu as pltpu

SOFTPLUS_BETA = 100.0
SOFTPLUS_THRESHOLD = 20.0  # nn.Softplus default: linear branch when beta*x > threshold


def _round_up(a, b):
    return (a + b - 1) // b * b


def _cdiv(a, b):
    return (a + b - 1) // b


def _softplus_beta(h, beta, threshold):
    # PyTorch Softplus(beta): x if beta*x > threshold else log1p(exp(beta*x)) / beta.
    bh = h * beta
    soft = jnp.log1p(jnp.exp(jnp.minimum(bh, threshold))) * (1.0 / beta)
    return jnp.where(bh > threshold, h, soft)


def _mlp_kernel(n_layers, sub_tn, beta, threshold, compute_dtype, unroll, *refs):
    # refs = (x_ref, W_0..W_{L-1}, b_0..b_{L-1}, o_ref)
    x_ref = refs[0]
    w_refs = refs[1:1 + n_layers]                 # (out_i, in_i)  PyTorch layout
    b_refs = refs[1 + n_layers:1 + 2 * n_layers]  # (out_i, 1)     f32
    o_ref = refs[1 + 2 * n_layers]                # (dim_out, tn)

    n_sub = x_ref.shape[-1] // sub_tn
    inv_beta = 1.0 / beta

    # Hoist parameter loads (and the one-off cast of the weights to the matmul
    # dtype) out of the sub-tile loop: each tiny VMEM block is read exactly once
    # per kernel invocation and reused across all sub-tiles / unrolled iterations.
    ws = [w_refs[i][...].astype(compute_dtype) for i in range(n_layers)]
    bs = [b_refs[i][...] for i in range(n_layers)]  # (out_i, 1), kept f32
    # NOTE: the bias lane-broadcast stays implicit in the `+ bs[i]` below; hoisting
    # it to (out_i, sub_tn) would pin ~16 vregs per hidden layer for the whole loop
    # and push the body into spills at sub_tn=256.

    def body(j, carry):
        start = pl.multiple_of(j * sub_tn, sub_tn)
        h = x_ref[:, pl.ds(start, sub_tn)].astype(compute_dtype)   # lane-dense
        for i in range(n_layers):
            # bf16/f32 MXU inputs, always f32 accumulation.
            h = jnp.dot(ws[i], h, preferred_element_type=jnp.float32) + bs[i]
            if i < n_layers - 1:
                # Softplus(beta=100), computed in f32 on the EUP/VPU.
                bh = h * beta
                soft = jnp.log1p(jnp.exp(jnp.minimum(bh, threshold))) * inv_beta
                h = jnp.where(bh > threshold, h, soft).astype(compute_dtype)
        # output_activation is None -> identity.
        o_ref[:, pl.ds(start, sub_tn)] = h.astype(o_ref.dtype)
        return carry

    lax.fori_loop(0, n_sub, body, 0, unroll=unroll)


@functools.partial(
    jax.jit,
    static_argnames=("tn", "sub_tn", "max_tn", "beta", "threshold",
                     "compute_dtype", "unroll"))
def sphere_init_mlp_pallas(x, params, *, tn=None, sub_tn=256, max_tn=8192,
                           beta=SOFTPLUS_BETA, threshold=SOFTPLUS_THRESHOLD,
                           compute_dtype="float32", unroll=None):
    """Forward pass.

    x:      [..., dim_in] float32 points.
    params: list of (W_eff, b) per linear layer; W_eff in PyTorch (out, in) layout
            (weight_norm already folded), b is (out,).
    compute_dtype: dtype of the MXU inputs ("float32" matches module semantics;
            "bfloat16" is a fast path with f32 accumulation on v6e/v7x).
    Returns [..., dim_out] float32.
    """
    compute_dtype = jnp.dtype(compute_dtype)
    lead = x.shape[:-1]
    dim_in = x.shape[-1]
    x2 = x.reshape(-1, dim_in).astype(jnp.float32)
    n = x2.shape[0]
    dim_out = params[-1][0].shape[0]
    n_layers = len(params)

    assert sub_tn % 128 == 0

    # Lane-tile selection: scale tn with N (big tiles amortize the ~0.35us/step
    # pipeline overhead), cap at max_tn, and keep an EVEN grid-step count when
    # there is more than one tile so both v7x TensorCores stay balanced.
    if tn is None:
        n_pad_min = _round_up(max(n, 1), sub_tn)
        n_sub_tiles = n_pad_min // sub_tn
        if n_sub_tiles <= 2:
            tn = sub_tn
            n_pad = n_pad_min
        else:
            steps = max(2, _cdiv(n_pad_min, max_tn))
            steps = _round_up(steps, 2)                 # even -> megacore balance
            tn = _round_up(_cdiv(n_pad_min, steps), sub_tn)
            n_pad = tn * steps
    else:
        assert tn % sub_tn == 0
        n_pad = _round_up(max(n, 1), tn)
    grid = n_pad // tn

    if unroll is None:
        # Modest unroll at sub_tn=128 for ILP; no unroll at >=256 to stay within
        # the 64-vreg file (spill control per perf review).
        unroll = 2 if sub_tn <= 128 else False

    # Batch on lanes: [dim_in, N_pad]; under jit the transpose/pad/slice fuse with
    # the surrounding program instead of being separate HBM passes.
    x_t = x2.T
    if n_pad != n:
        x_t = jnp.pad(x_t, ((0, 0), (0, n_pad - n)))

    weights = tuple(jnp.asarray(w, jnp.float32) for (w, _) in params)
    biases = tuple(jnp.asarray(b, jnp.float32).reshape(-1, 1) for (_, b) in params)

    kernel = functools.partial(_mlp_kernel, n_layers, sub_tn, beta, threshold,
                               compute_dtype, unroll)

    in_specs = [pl.BlockSpec((dim_in, tn), lambda i: (0, i))]
    for w in weights:
        in_specs.append(pl.BlockSpec(w.shape, lambda i: (0, 0)))  # VMEM-resident
    for b in biases:
        in_specs.append(pl.BlockSpec(b.shape, lambda i: (0, 0)))
    out_specs = pl.BlockSpec((dim_out, tn), lambda i: (0, i))     # lane-dense stores

    flops = 2 * n_pad * sum(w.shape[0] * w.shape[1] for w in weights)
    transcendentals = 2 * n_pad * sum(w.shape[0] for w in weights[:-1])  # exp+log1p
    bytes_accessed = 4 * (n_pad * (dim_in + dim_out)
                          + sum(int(w.size) for w in weights)
                          + sum(int(b.size) for b in biases))

    out_t = pl.pallas_call(
        kernel,
        out_shape=jax.ShapeDtypeStruct((dim_out, n_pad), jnp.float32),
        grid=(grid,),
        in_specs=in_specs,
        out_specs=out_specs,
        compiler_params=pltpu.CompilerParams(
            dimension_semantics=("parallel",)),
        cost_estimate=pl.CostEstimate(
            flops=flops,
            transcendentals=transcendentals,
            bytes_accessed=bytes_accessed),
    )(x_t, *weights, *biases)

    out = out_t[:, :n].T
    return out.reshape(*lead, dim_out)


def weight_norm_effective(v, g):
    # torch.nn.utils.weight_norm (dim=0): W = g * v / ||v||, norm per output row.
    norm = jnp.sqrt(jnp.sum(v * v, axis=1, keepdims=True))
    return v * (g.reshape(-1, 1) / norm)


def make_sphere_init_params(key, dim_in, dim_out, n_neurons, n_hidden_layers,
                            sphere_init_radius, inside_out=False):
    """Replicates SphereInitVanillaMLP.make_linear init (weights in (out, in) layout),
    then folds the weight_norm reparameterization into effective weights."""
    dims = [dim_in] + [n_neurons] * n_hidden_layers + [dim_out]
    n_layers = len(dims) - 1
    params = []
    for l in range(n_layers):
        d_in, d_out = dims[l], dims[l + 1]
        key, kw_, kg_ = jax.random.split(key, 3)
        is_first = (l == 0)
        is_last = (l == n_layers - 1)
        if is_last:
            mean = math.sqrt(math.pi) / math.sqrt(d_in)
            if inside_out:
                mean = -mean
            w = mean + 1e-4 * jax.random.normal(kw_, (d_out, d_in), jnp.float32)
            b = jnp.full((d_out,),
                         sphere_init_radius if inside_out else -sphere_init_radius,
                         jnp.float32)
        elif is_first:
            std = math.sqrt(2.0) / math.sqrt(d_out)
            w = std * jax.random.normal(kw_, (d_out, d_in), jnp.float32)
            w = w.at[:, 3:].set(0.0)   # sphere init zeroes non-xyz input columns
            b = jnp.zeros((d_out,), jnp.float32)
        else:
            std = math.sqrt(2.0) / math.sqrt(d_out)
            w = std * jax.random.normal(kw_, (d_out, d_in), jnp.float32)
            b = jnp.zeros((d_out,), jnp.float32)
        # weight_norm: g initialised to row norms (as torch does); perturb slightly
        # to emulate a trained parameter state so the fold is non-trivial.
        g = jnp.sqrt(jnp.sum(w * w, axis=1))
        g = g * (1.0 + 0.01 * jax.random.normal(kg_, g.shape, jnp.float32))
        params.append((weight_norm_effective(w, g), b))
    return params


def sphere_init_mlp_reference(x, params, beta=SOFTPLUS_BETA,
                              threshold=SOFTPLUS_THRESHOLD):
    h = x.astype(jnp.float32)
    for i, (w, b) in enumerate(params):
        h = h @ w.T + b
        if i < len(params) - 1:
            h = _softplus_beta(h, beta, threshold)
    return h


if __name__ == "__main__":
    # Config consistent with SphereInitVanillaMLP(dim_in, dim_out, config)
    dim_in, dim_out = 4, 4
    n_neurons, n_hidden_layers = 64, 2
    sphere_init_radius = 0.5
    inside_out = False
    N = 300  # deliberately not a multiple of 256: exercises lane padding + 2-step grid

    key = jax.random.PRNGKey(0)
    kx, kw = jax.random.split(key)
    x = jax.random.normal(kx, (N, dim_in), dtype=jnp.float32)
    params = make_sphere_init_params(kw, dim_in, dim_out, n_neurons,
                                     n_hidden_layers, sphere_init_radius,
                                     inside_out=inside_out)

    ref = sphere_init_mlp_reference(x, params)

    # f32 path: matches the module's autocast-disabled semantics.
    out = jax.block_until_ready(sphere_init_mlp_pallas(x, params))
    assert out.shape == (N, dim_out)
    max_err = float(jnp.max(jnp.abs(out - ref)))
    assert jnp.allclose(out, ref, atol=5e-4, rtol=5e-4), (
        f"f32 mismatch vs reference, max abs err = {max_err}")

    # bf16-MXU fast path (f32 accumulation) — loose tolerance, finite check.
    out_bf16 = jax.block_until_ready(
        sphere_init_mlp_pallas(x, params, compute_dtype="bfloat16"))
    assert bool(jnp.all(jnp.isfinite(out_bf16)))
    max_err_bf16 = float(jnp.max(jnp.abs(out_bf16 - ref)))
    assert jnp.allclose(out_bf16, ref, atol=1e-1, rtol=1e-1), (
        f"bf16 mismatch vs reference, max abs err = {max_err_bf16}")

    print("KERNEL_OK")
</pallas_src>

<mosaic_0001>
module attributes {stable_mosaic.version = 11 : i64} {
  func.func @_mlp_kernel(%arg0: i32, %arg1: memref<4x256xf32, #tpu.memory_space<vmem>>, %arg2: memref<64x4xf32, #tpu.memory_space<vmem>>, %arg3: memref<64x64xf32, #tpu.memory_space<vmem>>, %arg4: memref<4x64xf32, #tpu.memory_space<vmem>>, %arg5: memref<64x1xf32, #tpu.memory_space<vmem>>, %arg6: memref<64x1xf32, #tpu.memory_space<vmem>>, %arg7: memref<4x1xf32, #tpu.memory_space<vmem>>, %arg8: memref<4x256xf32, #tpu.memory_space<vmem>>) attributes {dimension_semantics = [#tpu.dimension_semantics<parallel>], iteration_bounds = array<i64: 2>, scalar_prefetch = 0 : i64, scratch_operands = 0 : i64, tpu.core_type = #tpu.core_type<tc>, window_params = [{transform_indices = @transform_0, window_bounds = array<i64: 4, 256>}, {pipeline_mode = #tpu.pipeline_mode<synchronous>, transform_indices = @transform_1, window_bounds = array<i64: 64, 4>}, {pipeline_mode = #tpu.pipeline_mode<synchronous>, transform_indices = @transform_2, window_bounds = array<i64: 64, 64>}, {pipeline_mode = #tpu.pipeline_mode<synchronous>, transform_indices = @transform_3, window_bounds = array<i64: 4, 64>}, {pipeline_mode = #tpu.pipeline_mode<synchronous>, transform_indices = @transform_4, window_bounds = array<i64: 64, 1>}, {pipeline_mode = #tpu.pipeline_mode<synchronous>, transform_indices = @transform_5, window_bounds = array<i64: 64, 1>}, {pipeline_mode = #tpu.pipeline_mode<synchronous>, transform_indices = @transform_6, window_bounds = array<i64: 4, 1>}, {transform_indices = @transform_7, window_bounds = array<i64: 4, 256>}]} {
    %c0 = arith.constant 0 : index
    %c0_0 = arith.constant 0 : index
    %0 = vector.load %arg2[%c0, %c0_0] : memref<64x4xf32, #tpu.memory_space<vmem>>, vector<64x4xf32>
    %c0_1 = arith.constant 0 : index
    %c0_2 = arith.constant 0 : index
    %1 = vector.load %arg3[%c0_1, %c0_2] : memref<64x64xf32, #tpu.memory_space<vmem>>, vector<64x64xf32>
    %c0_3 = arith.constant 0 : index
    %c0_4 = arith.constant 0 : index
    %2 = vector.load %arg4[%c0_3, %c0_4] : memref<4x64xf32, #tpu.memory_space<vmem>>, vector<4x64xf32>
    %c0_5 = arith.constant 0 : index
    %c0_6 = arith.constant 0 : index
    %3 = vector.load %arg5[%c0_5, %c0_6] : memref<64x1xf32, #tpu.memory_space<vmem>>, vector<64x1xf32>
    %c0_7 = arith.constant 0 : index
    %c0_8 = arith.constant 0 : index
    %4 = vector.load %arg6[%c0_7, %c0_8] : memref<64x1xf32, #tpu.memory_space<vmem>>, vector<64x1xf32>
    %c0_9 = arith.constant 0 : index
    %c0_10 = arith.constant 0 : index
    %5 = vector.load %arg7[%c0_9, %c0_10] : memref<4x1xf32, #tpu.memory_space<vmem>>, vector<4x1xf32>
    %c0_i32 = arith.constant 0 : i32
    %c256_i32 = arith.constant 256 : i32
    %6 = arith.muli %c0_i32, %c256_i32 : i32
    %7 = tpu.assume_multiple %6, 256 : i32
    %c0_11 = arith.constant 0 : index
    %8 = arith.index_cast %7 : i32 to index
    %9 = vector.load %arg1[%c0_11, %8] : memref<4x256xf32, #tpu.memory_space<vmem>>, vector<4x256xf32>
    %cst = arith.constant dense<0.000000e+00> : vector<64x256xf32>
    %10 = tpu.matmul %0, %9, %cst {dimension_numbers = #tpu.dot_dimension_numbers<[1], [0], [0], [1], [0, 0, 1, 1], [], []>} : vector<64x4xf32>, vector<4x256xf32>, vector<64x256xf32> -> vector<64x256xf32>
    %11 = vector.broadcast %3 : vector<64x1xf32> to vector<64x256xf32>
    %12 = arith.addf %10, %11 : vector<64x256xf32>
    %cst_12 = arith.constant 1.000000e+02 : f32
    %13 = vector.broadcast %cst_12 : f32 to vector<64x256xf32>
    %14 = arith.mulf %12, %13 : vector<64x256xf32>
    %cst_13 = arith.constant 2.000000e+01 : f32
    %15 = vector.broadcast %cst_13 : f32 to vector<64x256xf32>
    %16 = arith.minimumf %14, %15 : vector<64x256xf32>
    %17 = math.exp %16 : vector<64x256xf32>
    %18 = math.log1p %17 : vector<64x256xf32>
    %cst_14 = arith.constant 0.00999999977 : f32
    %19 = vector.broadcast %cst_14 : f32 to vector<64x256xf32>
    %20 = arith.mulf %18, %19 : vector<64x256xf32>
    %cst_15 = arith.constant 2.000000e+01 : f32
    %21 = vector.broadcast %cst_15 : f32 to vector<64x256xf32>
    %22 = arith.cmpf ogt, %14, %21 : vector<64x256xf32>
    %23 = arith.select %22, %12, %20 : vector<64x256xi1>, vector<64x256xf32>
    %cst_16 = arith.constant dense<0.000000e+00> : vector<64x256xf32>
    %24 = tpu.matmul %1, %23, %cst_16 {dimension_numbers = #tpu.dot_dimension_numbers<[1], [0], [0], [1], [0, 0, 1, 1], [], []>} : vector<64x64xf32>, vector<64x256xf32>, vector<64x256xf32> -> vector<64x256xf32>
    %25 = vector.broadcast %4 : vector<64x1xf32> to vector<64x256xf32>
    %26 = arith.addf %24, %25 : vector<64x256xf32>
    %cst_17 = arith.constant 1.000000e+02 : f32
    %27 = vector.broadcast %cst_17 : f32 to vector<64x256xf32>
    %28 = arith.mulf %26, %27 : vector<64x256xf32>
    %cst_18 = arith.constant 2.000000e+01 : f32
    %29 = vector.broadcast %cst_18 : f32 to vector<64x256xf32>
    %30 = arith.minimumf %28, %29 : vector<64x256xf32>
    %31 = math.exp %30 : vector<64x256xf32>
    %32 = math.log1p %31 : vector<64x256xf32>
    %cst_19 = arith.constant 0.00999999977 : f32
    %33 = vector.broadcast %cst_19 : f32 to vector<64x256xf32>
    %34 = arith.mulf %32, %33 : vector<64x256xf32>
    %cst_20 = arith.constant 2.000000e+01 : f32
    %35 = vector.broadcast %cst_20 : f32 to vector<64x256xf32>
    %36 = arith.cmpf ogt, %28, %35 : vector<64x256xf32>
    %37 = arith.select %36, %26, %34 : vector<64x256xi1>, vector<64x256xf32>
    %cst_21 = arith.constant dense<0.000000e+00> : vector<4x256xf32>
    %38 = tpu.matmul %2, %37, %cst_21 {dimension_numbers = #tpu.dot_dimension_numbers<[1], [0], [0], [1], [0, 0, 1, 1], [], []>} : vector<4x64xf32>, vector<64x256xf32>, vector<4x256xf32> -> vector<4x256xf32>
    %39 = vector.broadcast %5 : vector<4x1xf32> to vector<4x256xf32>
    %40 = arith.addf %38, %39 : vector<4x256xf32>
    %c0_22 = arith.constant 0 : index
    %41 = arith.index_cast %7 : i32 to index
    %42 = vector.load %arg8[%c0_22, %41] : memref<4x256xf32, #tpu.memory_space<vmem>>, vector<4x256xf32>
    tpu.vector_store %arg8[%c0_22, %41], %40 {strides = array<i32>} : memref<4x256xf32, #tpu.memory_space<vmem>>, vector<4x256xf32>,
    %c1_i32 = arith.constant 1 : i32
    return
  }
  func.func @transform_0(%arg0: i32) -> (i32, i32) {
    %c0_i32 = arith.constant 0 : i32
    %c0_i32_0 = arith.constant 0 : i32
    return %c0_i32, %arg0 : i32, i32
  }
  func.func @transform_1(%arg0: i32) -> (i32, i32) {
    %c0_i32 = arith.constant 0 : i32
    %c0_i32_0 = arith.constant 0 : i32
    %c0_i32_1 = arith.constant 0 : i32
    return %c0_i32, %c0_i32_0 : i32, i32
  }
  func.func @transform_2(%arg0: i32) -> (i32, i32) {
    %c0_i32 = arith.constant 0 : i32
    %c0_i32_0 = arith.constant 0 : i32
    %c0_i32_1 = arith.constant 0 : i32
    return %c0_i32, %c0_i32_0 : i32, i32
  }
  func.func @transform_3(%arg0: i32) -> (i32, i32) {
    %c0_i32 = arith.constant 0 : i32
    %c0_i32_0 = arith.constant 0 : i32
    %c0_i32_1 = arith.constant 0 : i32
    return %c0_i32, %c0_i32_0 : i32, i32
  }
  func.func @transform_4(%arg0: i32) -> (i32, i32) {
    %c0_i32 = arith.constant 0 : i32
    %c0_i32_0 = arith.constant 0 : i32
    %c0_i32_1 = arith.constant 0 : i32
    return %c0_i32, %c0_i32_0 : i32, i32
  }
  func.func @transform_5(%arg0: i32) -> (i32, i32) {
    %c0_i32 = arith.constant 0 : i32
    %c0_i32_0 = arith.constant 0 : i32
    %c0_i32_1 = arith.constant 0 : i32
    return %c0_i32, %c0_i32_0 : i32, i32
  }
  func.func @transform_6(%arg0: i32) -> (i32, i32) {
    %c0_i32 = arith.constant 0 : i32
    %c0_i32_0 = arith.constant 0 : i32
    %c0_i32_1 = arith.constant 0 : i32
    return %c0_i32, %c0_i32_0 : i32, i32
  }
  func.func @transform_7(%arg0: i32) -> (i32, i32) {
    %c0_i32 = arith.constant 0 : i32
    %c0_i32_0 = arith.constant 0 : i32
    return %c0_i32, %arg0 : i32, i32
  }
}

</mosaic_0001>

<llo_original>
// kernel: sphere_init_mlp_pallas.1
$region0: #{sphere_init_mlp_pallas.1}
  #allocation0 [shape = 'u32[]', space=smem, size = 0x4, offset = 0x4, fixed_abs, tag = 'smem constant byte address 0x4 - core index']
  #allocation1 [shape = 'u32[144,128]{1,0:T(1,128)}', space=vmem, size = 0x12000, scoped, tag = 'internal scratch']
  %s0 = inlined_call_operand.vmem [shape: f32[4,512], index: 0, kind: input, shape index: {}]
  %s1 = inlined_call_operand.vmem [shape: f32[64,4], index: 1, kind: input, shape index: {}]
  %s2 = inlined_call_operand.vmem [shape: f32[64,64], index: 2, kind: input, shape index: {}]
  %s3 = inlined_call_operand.vmem [shape: f32[4,64], index: 3, kind: input, shape index: {}]
  %s4 = inlined_call_operand.vmem [shape: f32[64,1], index: 4, kind: input, shape index: {}]
  %s5 = inlined_call_operand.vmem [shape: f32[64,1], index: 5, kind: input, shape index: {}]
  %s6 = inlined_call_operand.vmem [shape: f32[4,1], index: 6, kind: input, shape index: {}]
  %s7 = inlined_call_operand.vmem [shape: f32[4,512], index: 7, kind: output, shape index: {}]
  %s8 = sld [smem:[#allocation0]]
  $region61: #{sphere_init_mlp_pallas.1} parent=0
    _
  %s10 = ssub.s32 1, %s8
  %s11 = scalar_select 0, %s10, %s8
  loop: start=0, step=1, limit=4
  $region2: #{sphere_init_mlp_pallas.1} parent=0 // loop_pre_header
    _
  $region3: #{sphere_init_mlp_pallas.1} parent=0 // loop_header
    %s13 = sphi 0, %s17
    %p14 = scmp.ge.s32.totalorder %s13, 4
    %s23 = sphi 0, %s25
    %s26 = sphi 0, %s23
    %s27 = sphi 0, %s26
    %s43 = sphi 0, %s27
    %s47 = sphi 0, %s47
    %s49 = sphi 0, %s47
    %s50 = sphi 0, %s49
    %s64 = sphi 0, %s50
    %s68 = sphi 0, %s68
    %s70 = sphi 0, %s68
    %s71 = sphi 0, %s70
    %s85 = sphi 0, %s71
    %s89 = sphi 0, %s89
    %s91 = sphi 0, %s89
    %s92 = sphi 0, %s91
    %s106 = sphi 0, %s92
    %s110 = sphi 0, %s110
    %s112 = sphi 0, %s110
    %s113 = sphi 0, %s112
    %s127 = sphi 0, %s113
    %s131 = sphi 0, %s131
    %s133 = sphi 0, %s131
    %s134 = sphi 0, %s133
    %s148 = sphi 0, %s134
    %s152 = sphi 0, %s152
    %s154 = sphi 0, %s152
    %s155 = sphi 0, %s154
    %s169 = sphi 0, %s155
    %s175 = sphi 0, %s177
    %s178 = sphi 0, %s175
    %s179 = sphi 0, %s178
    %s195 = sphi 0, %s179
  $region4: #{sphere_init_mlp_pallas.1} parent=0 // loop_header_branch
    %16 = sbr.rel (%p14) target = $region8
  $region5: #{sphere_init_mlp_pallas.1} parent=0 // loop_body
    %s18 = ssub.s32 %s13, 1
    %s19 = ssub.s32 %s13, 2
    %s20 = sadd.s32 %s13, 1
    %s21 = ssub.s32 %s13, %s20
    %p22 = scmp.eq.s32.totalorder %s21, 0
    %s24 = sadd.s32 %s23, 1
    %s25 = scalar_select %p22, %s23, %s24
    %p28 = pneg %p22
    %p29 = scmp.eq.s32.totalorder %s13, 1
    %p30 = por %p28, %p29
    %p31 = scmp.ne.s32.totalorder %s23, %s26
    %p32 = scmp.eq.s32.totalorder %s13, 0
    %p33 = por %p31, %p32
    %p34 = scmp.ne.s32.totalorder %s23, %s26
    %p35 = scmp.eq.s32.totalorder %s18, 1
    %p36 = por %p34, %p35
    %p37 = scmp.ne.s32.totalorder %s26, %s27
    %p38 = scmp.eq.s32.totalorder %s18, 0
    %p39 = por %p37, %p38
    %p40 = scmp.ne.s32.totalorder %s26, %s27
    %p41 = scmp.eq.s32.totalorder %s19, 1
    %p42 = por %p40, %p41
    %p44 = scmp.ne.s32.totalorder %s27, %s43
    %p45 = scmp.eq.s32.totalorder %s19, 0
    %p46 = por %p44, %p45
    %s48 = sadd.s32 %s47, 1
    %p51 = scmp.eq.s32.totalorder %s13, 1
    %p52 = scmp.ne.s32.totalorder %s47, %s49
    %p53 = scmp.eq.s32.totalorder %s13, 0
    %p54 = por %p52, %p53
    %p55 = scmp.ne.s32.totalorder %s47, %s49
    %p56 = scmp.eq.s32.totalorder %s18, 1
    %p57 = por %p55, %p56
    %p58 = scmp.ne.s32.totalorder %s49, %s50
    %p59 = scmp.eq.s32.totalorder %s18, 0
    %p60 = por %p58, %p59
    %p61 = scmp.ne.s32.totalorder %s49, %s50
    %p62 = scmp.eq.s32.totalorder %s19, 1
    %p63 = por %p61, %p62
    %p65 = scmp.ne.s32.totalorder %s50, %s64
    %p66 = scmp.eq.s32.totalorder %s19, 0
    %p67 = por %p65, %p66
    %s69 = sadd.s32 %s68, 1
    %p72 = scmp.eq.s32.totalorder %s13, 1
    %p73 = scmp.ne.s32.totalorder %s68, %s70
    %p74 = scmp.eq.s32.totalorder %s13, 0
    %p75 = por %p73, %p74
    %p76 = scmp.ne.s32.totalorder %s68, %s70
    %p77 = scmp.eq.s32.totalorder %s18, 1
    %p78 = por %p76, %p77
    %p79 = scmp.ne.s32.totalorder %s70, %s71
    %p80 = scmp.eq.s32.totalorder %s18, 0
    %p81 = por %p79, %p80
    %p82 = scmp.ne.s32.totalorder %s70, %s71
    %p83 = scmp.eq.s32.totalorder %s19, 1
    %p84 = por %p82, %p83
    %p86 = scmp.ne.s32.totalorder %s71, %s85
    %p87 = scmp.eq.s32.totalorder %s19, 0
    %p88 = por %p86, %p87
    %s90 = sadd.s32 %s89, 1
    %p93 = scmp.eq.s32.totalorder %s13, 1
    %p94 = scmp.ne.s32.totalorder %s89, %s91
    %p95 = scmp.eq.s32.totalorder %s13, 0
    %p96 = por %p94, %p95
    %p97 = scmp.ne.s32.totalorder %s89, %s91
    %p98 = scmp.eq.s32.totalorder %s18, 1
    %p99 = por %p97, %p98
    %p100 = scmp.ne.s32.totalorder %s91, %s92
    %p101 = scmp.eq.s32.totalorder %s18, 0
    %p102 = por %p100, %p101
    %p103 = scmp.ne.s32.totalorder %s91, %s92
    %p104 = scmp.eq.s32.totalorder %s19, 1
    %p105 = por %p103, %p104
    %p107 = scmp.ne.s32.totalorder %s92, %s106
    %p108 = scmp.eq.s32.totalorder %s19, 0
    %p109 = por %p107, %p108
    %s111 = sadd.s32 %s110, 1
    %p114 = scmp.eq.s32.totalorder %s13, 1
    %p115 = scmp.ne.s32.totalorder %s110, %s112
    %p116 = scmp.eq.s32.totalorder %s13, 0
    %p117 = por %p115, %p116
    %p118 = scmp.ne.s32.totalorder %s110, %s112
    %p119 = scmp.eq.s32.totalorder %s18, 1
    %p120 = por %p118, %p119
    %p121 = scmp.ne.s32.totalorder %s112, %s113
    %p122 = scmp.eq.s32.totalorder %s18, 0
    %p123 = por %p121, %p122
    %p124 = scmp.ne.s32.totalorder %s112, %s113
    %p125 = scmp.eq.s32.totalorder %s19, 1
    %p126 = por %p124, %p125
    %p128 = scmp.ne.s32.totalorder %s113, %s127
    %p129 = scmp.eq.s32.totalorder %s19, 0
    %p130 = por %p128, %p129
    %s132 = sadd.s32 %s131, 1
    %p135 = scmp.eq.s32.totalorder %s13, 1
    %p136 = scmp.ne.s32.totalorder %s131, %s133
    %p137 = scmp.eq.s32.totalorder %s13, 0
    %p138 = por %p136, %p137
    %p139 = scmp.ne.s32.totalorder %s131, %s133
    %p140 = scmp.eq.s32.totalorder %s18, 1
    %p141 = por %p139, %p140
    %p142 = scmp.ne.s32.totalorder %s133, %s134
    %p143 = scmp.eq.s32.totalorder %s18, 0
    %p144 = por %p142, %p143
    %p145 = scmp.ne.s32.totalorder %s133, %s134
    %p146 = scmp.eq.s32.totalorder %s19, 1
    %p147 = por %p145, %p146
    %p149 = scmp.ne.s32.totalorder %s134, %s148
    %p150 = scmp.eq.s32.totalorder %s19, 0
    %p151 = por %p149, %p150
    %s153 = sadd.s32 %s152, 1
    %p156 = scmp.eq.s32.totalorder %s13, 1
    %p157 = scmp.ne.s32.totalorder %s152, %s154
    %p158 = scmp.eq.s32.totalorder %s13, 0
    %p159 = por %p157, %p158
    %p160 = scmp.ne.s32.totalorder %s152, %s154
    %p161 = scmp.eq.s32.totalorder %s18, 1
    %p162 = por %p160, %p161
    %p163 = scmp.ne.s32.totalorder %s154, %s155
    %p164 = scmp.eq.s32.totalorder %s18, 0
    %p165 = por %p163, %p164
    %p166 = scmp.ne.s32.totalorder %s154, %s155
    %p167 = scmp.eq.s32.totalorder %s19, 1
    %p168 = por %p166, %p167
    %p170 = scmp.ne.s32.totalorder %s155, %s169
    %p171 = scmp.eq.s32.totalorder %s19, 0
    %p172 = por %p170, %p171
    %s173 = ssub.s32 %s13, %s20
    %p174 = scmp.eq.s32.totalorder %s173, 0
    %s176 = sadd.s32 %s175, 1
    %s177 = scalar_select %p174, %s175, %s176
    %p180 = pneg %p174
    %p181 = scmp.eq.s32.totalorder %s13, 1
    %p182 = por %p180, %p181
    %p183 = scmp.ne.s32.totalorder %s175, %s178
    %p184 = scmp.eq.s32.totalorder %s13, 0
    %p185 = por %p183, %p184
    %p186 = scmp.ne.s32.totalorder %s175, %s178
    %p187 = scmp.eq.s32.totalorder %s18, 1
    %p188 = por %p186, %p187
    %p189 = scmp.ne.s32.totalorder %s178, %s179
    %p190 = scmp.eq.s32.totalorder %s18, 0
    %p191 = por %p189, %p190
    %p192 = scmp.ne.s32.totalorder %s178, %s179
    %p193 = scmp.eq.s32.totalorder %s19, 1
    %p194 = por %p192, %p193
    %p196 = scmp.ne.s32.totalorder %s179, %s195
    %p197 = scmp.eq.s32.totalorder %s19, 0
    %p198 = por %p196, %p197
    %p199 = scmp.le.s32.totalorder 1, %s13
    %p200 = scmp.lt.s32.totalorder %s13, 3
    %p201 = pnand %p199, %p200
    %p202 = pneg %p201
    // Predicated region
    $region9: #{sphere_init_mlp_pallas.1} parent=5 // pred_check
      _
    $region10: #{sphere_init_mlp_pallas.1} parent=5 // pred_check_branch
      %204 = sbr.rel (%p201) target = $region12
    $region11: #{sphere_init_mlp_pallas.1} parent=5 // pred_region
      %s205 = ssub.s32 %s13, 1
      // Predicated region
      $region13: #{sphere_init_mlp_pallas.1} parent=11 // pred_check
        %p206 = pneg %p60
      $region14: #{sphere_init_mlp_pallas.1} parent=11 // pred_check_branch
        %208 = sbr.rel (%p206) target = $region16
      $region15: #{sphere_init_mlp_pallas.1} parent=11 // pred_region
        _
      $region16: #{sphere_init_mlp_pallas.1} parent=11 // pred_fallthru
        _
      // Predicated region
      $region17: #{sphere_init_mlp_pallas.1} parent=11 // pred_check
        %p209 = pneg %p81
      $region18: #{sphere_init_mlp_pallas.1} parent=11 // pred_check_branch
        %211 = sbr.rel (%p209) target = $region20
      $region19: #{sphere_init_mlp_pallas.1} parent=11 // pred_region
        _
      $region20: #{sphere_init_mlp_pallas.1} parent=11 // pred_fallthru
        _
      // Predicated region
      $region21: #{sphere_init_mlp_pallas.1} parent=11 // pred_check
        %p212 = pneg %p102
      $region22: #{sphere_init_mlp_pallas.1} parent=11 // pred_check_branch
        %214 = sbr.rel (%p212) target = $region24
      $region23: #{sphere_init_mlp_pallas.1} parent=11 // pred_region
        _
      $region24: #{sphere_init_mlp_pallas.1} parent=11 // pred_fallthru
        _
      // Predicated region
      $region25: #{sphere_init_mlp_pallas.1} parent=11 // pred_check
        %p215 = pneg %p123
      $region26: #{sphere_init_mlp_pallas.1} parent=11 // pred_check_branch
        %217 = sbr.rel (%p215) target = $region28
      $region27: #{sphere_init_mlp_pallas.1} parent=11 // pred_region
        _
      $region28: #{sphere_init_mlp_pallas.1} parent=11 // pred_fallthru
        _
      // Predicated region
      $region29: #{sphere_init_mlp_pallas.1} parent=11 // pred_check
        %p218 = pneg %p144
      $region30: #{sphere_init_mlp_pallas.1} parent=11 // pred_check_branch
        %220 = sbr.rel (%p218) target = $region32
      $region31: #{sphere_init_mlp_pallas.1} parent=11 // pred_region
        _
      $region32: #{sphere_init_mlp_pallas.1} parent=11 // pred_fallthru
        _
      // Predicated region
      $region33: #{sphere_init_mlp_pallas.1} parent=11 // pred_check
        %p221 = pneg %p165
      $region34: #{sphere_init_mlp_pallas.1} parent=11 // pred_check_branch
        %223 = sbr.rel (%p221) target = $region36
      $region35: #{sphere_init_mlp_pallas.1} parent=11 // pred_region
        _
      $region36: #{sphere_init_mlp_pallas.1} parent=11 // pred_fallthru
        _
    $region12: #{sphere_init_mlp_pallas.1} parent=5 // pred_fallthru
      _
    %p224 = scmp.lt.s32.totalorder %s13, 2
    // Predicated region
    $region37: #{sphere_init_mlp_pallas.1} parent=5 // pred_check
      %p225 = pneg %p224
    $region38: #{sphere_init_mlp_pallas.1} parent=5 // pred_check_branch
      %227 = sbr.rel (%p225) target = $region40
    $region39: #{sphere_init_mlp_pallas.1} parent=5 // pred_region
      // Predicated region
      $region41: #{sphere_init_mlp_pallas.1} parent=39 // pred_check
        %p228 = pneg %p33
      $region42: #{sphere_init_mlp_pallas.1} parent=39 // pred_check_branch
        %230 = sbr.rel (%p228) target = $region44
      $region43: #{sphere_init_mlp_pallas.1} parent=39 // pred_region
        %s231 = smul.u32 2, %s13
        %p232 = scmp.lt.s32.totalorder %s231, 3
        %s233 = scalar_select %p232, %s231, 3
        %s234 = smul.addr %s233, 4
        %s235 = scalar_lea.vmem %s0, %s234
        %s236 = smul.u32 2, %s13
      $region44: #{sphere_init_mlp_pallas.1} parent=39 // pred_fallthru
        _
    $region40: #{sphere_init_mlp_pallas.1} parent=5 // pred_fallthru
      _
    %p237 = scmp.le.s32.totalorder 1, %s13
    %p238 = scmp.lt.s32.totalorder %s13, 3
    %p239 = pnand %p237, %p238
    %p240 = pneg %p239
    // Predicated region
    $region45: #{sphere_init_mlp_pallas.1} parent=5 // pred_check
      _
    $region46: #{sphere_init_mlp_pallas.1} parent=5 // pred_check_branch
      %242 = sbr.rel (%p239) target = $region48
    $region47: #{sphere_init_mlp_pallas.1} parent=5 // pred_region
      %s243 = ssub.s32 %s13, 1
      %s244 = smul.u32 2, %s18
      %p245 = scmp.lt.s32.totalorder %s244, 3
      %s246 = scalar_select %p245, %s244, 3
      %s247 = smul.addr %s246, 4
      %s248 = scalar_lea.vmem %s0, %s247
      %p249 = pneg %p39
      %p250 = pneg %p36
      %p251 = pneg %p60
      %p252 = pneg %p57
      %p253 = pneg %p81
      %p254 = pneg %p78
      %p255 = pneg %p102
      %p256 = pneg %p99
      %p257 = pneg %p123
      %p258 = pneg %p120
      %p259 = pneg %p144
      %p260 = pneg %p141
      %p261 = pneg %p165
      %p262 = pneg %p162
      %p263 = pneg %p191
      %p264 = pneg %p188
      %s265 = smul.u32 2, %s18
      %p266 = scmp.lt.s32.totalorder %s265, 3
      %s267 = scalar_select %p266, %s265, 3
      %s268 = smul.addr %s267, 4
      %s269 = scalar_lea.vmem %s7, %s268
      %s270 = smul.u32 2, %s18
      %p271 = scmp.lt.s32.totalorder %s270, 3
      %s272 = scalar_select %p271, %s270, 3
      %s273 = smul.addr %s272, 4
      %s274 = scalar_lea.vmem %s0, %s273
      %s275 = smul.u32 2, %s18
      %s276 = smul.u32 2, %s18
      %p277 = scmp.lt.s32.totalorder %s276, 3
      %s278 = scalar_select %p277, %s276, 3
      %s279 = smul.addr %s278, 4
      %s280 = scalar_lea.vmem %s7, %s279
      %s281 = smul.u32 2, %s18
      %v282 = vld [vmem:[%s1] sm:$0xff]
      %v283 = vld [vmem:[%s1 + $0x8] sm:$0xff]
      %v284 = vld [vmem:[%s1 + $0x10] sm:$0xff]
      %v285 = vld [vmem:[%s1 + $0x18] sm:$0xff]
      %v286 = vld [vmem:[%s1 + $0x20] sm:$0xff]
      %v287 = vld [vmem:[%s1 + $0x28] sm:$0xff]
      %v288 = vld [vmem:[%s1 + $0x30] sm:$0xff]
      %v289 = vld [vmem:[%s1 + $0x38] sm:$0xff]
      %v290 = vld [vmem:[%s2] sm:$0xff]
      %v291 = vld [vmem:[%s2 + $0x8] sm:$0xff]
      %v292 = vld [vmem:[%s2 + $0x10] sm:$0xff]
      %v293 = vld [vmem:[%s2 + $0x18] sm:$0xff]
      %v294 = vld [vmem:[%s2 + $0x20] sm:$0xff]
      %v295 = vld [vmem:[%s2 + $0x28] sm:$0xff]
      %v296 = vld [vmem:[%s2 + $0x30] sm:$0xff]
      %v297 = vld [vmem:[%s2 + $0x38] sm:$0xff]
      %v298 = vld [vmem:[%s3] sm:$0xf]
      %v299 = vld [vmem:[%s4] sm:$0xff]
      %v300 = vld [vmem:[%s4 + $0x8] sm:$0xff]
      %v301 = vld [vmem:[%s4 + $0x10] sm:$0xff]
      %v302 = vld [vmem:[%s4 + $0x18] sm:$0xff]
      %v303 = vld [vmem:[%s4 + $0x20] sm:$0xff]
      %v304 = vld [vmem:[%s4 + $0x28] sm:$0xff]
      %v305 = vld [vmem:[%s4 + $0x30] sm:$0xff]
      %v306 = vld [vmem:[%s4 + $0x38] sm:$0xff]
      %v307 = vld [vmem:[%s5] sm:$0xff]
      %v308 = vld [vmem:[%s5 + $0x8] sm:$0xff]
      %v309 = vld [vmem:[%s5 + $0x10] sm:$0xff]
      %v310 = vld [vmem:[%s5 + $0x18] sm:$0xff]
      %v311 = vld [vmem:[%s5 + $0x20] sm:$0xff]
      %v312 = vld [vmem:[%s5 + $0x28] sm:$0xff]
      %v313 = vld [vmem:[%s5 + $0x30] sm:$0xff]
      %v314 = vld [vmem:[%s5 + $0x38] sm:$0xff]
      %v315 = vld [vmem:[%s6] sm:$0xf]
      %v316 = vld [vmem:[%s274] sm:$0xff]
      %318 = vset.pattern.permute.xlu0 0
      %319 = vperm.xlu0 %318, %v299
      %v320 = vpop.permute.xlu0 %319
      %323 = vset.pattern.permute.xlu0 0
      %324 = vperm.xlu0 %323, %v300
      %v325 = vpop.permute.xlu0 %324
      %328 = vset.pattern.permute.xlu0 0
      %329 = vperm.xlu0 %328, %v301
      %v330 = vpop.permute.xlu0 %329
      %333 = vset.pattern.permute.xlu0 0
      %334 = vperm.xlu0 %333, %v302
      %v335 = vpop.permute.xlu0 %334
      %338 = vset.pattern.permute.xlu0 0
      %339 = vperm.xlu0 %338, %v303
      %v340 = vpop.permute.xlu0 %339
      %343 = vset.pattern.permute.xlu0 0
      %344 = vperm.xlu0 %343, %v304
      %v345 = vpop.permute.xlu0 %344
      %348 = vset.pattern.permute.xlu0 0
      %349 = vperm.xlu0 %348, %v305
      %v350 = vpop.permute.xlu0 %349
      %353 = vset.pattern.permute.xlu0 0
      %354 = vperm.xlu0 %353, %v306
      %v355 = vpop.permute.xlu0 %354
      %v358 = vcombine.high %v316, %v316
      %vm359 = vcmask 31744
      %v361 = vsel %vm359, %v282, 0
      %v364 = vsel %vm359, %v283, 0
      %v367 = vsel %vm359, %v284, 0
      %v370 = vsel %vm359, %v285, 0
      %v373 = vsel %vm359, %v286, 0
      %v376 = vsel %vm359, %v287, 0
      %v379 = vsel %vm359, %v288, 0
      %v382 = vsel %vm359, %v289, 0
      %vm384 = vcmask 1043456
      %v385 = vsel %vm384, %v316, 0
      %v387 = vsel %vm384, %v358, 0
      %389 = vmatprep.subr.mxu0 %v387
      %390 = vmatpush1.msra.mxu0 %v385
      %391 = vmatprep.subr.mxu0 0.0
      %392 = vmatpush1.msra.mxu0 0.0
      %393 = vmatprep.subr.mxu0 0.0
      %394 = vmatpush1.msra.mxu0 0.0
      %395 = vmatprep.subr.mxu0 0.0
      %396 = vmatpush1.msra.mxu0 0.0
      %397 = vmatprep.subr.mxu0 0.0
      %398 = vmatpush1.msra.mxu0 0.0
      %399 = vmatprep.subr.mxu0 0.0
      %400 = vmatpush1.msra.mxu0 0.0
      %401 = vmatprep.subr.mxu0 0.0
      %402 = vmatpush1.msra.mxu0 0.0
      %403 = vmatprep.subr.mxu0 0.0
      %404 = vmatpush1.msra.mxu0 0.0
      %405 = vmatprep.subr.mxu0 0.0
      %406 = vmatpush1.msra.mxu0 0.0
      %407 = vmatprep.subr.mxu0 0.0
      %408 = vmatpush1.msra.mxu0 0.0
      %409 = vmatprep.subr.mxu0 0.0
      %410 = vmatpush1.msra.mxu0 0.0
      %411 = vmatprep.subr.mxu0 0.0
      %412 = vmatpush1.msra.mxu0 0.0
      %413 = vmatprep.subr.mxu0 0.0
      %414 = vmatpush1.msra.mxu0 0.0
      %415 = vmatprep.subr.mxu0 0.0
      %416 = vmatpush1.msra.mxu0 0.0
      %417 = vmatprep.subr.mxu0 0.0
      %418 = vmatpush1.msra.mxu0 0.0
      %419 = vmatprep.subr.mxu0 0.0
      %420 = vmatpush1.msra.mxu0 0.0
      %421 = vmatprep.subr.mxu0 0.0
      %422 = vmatpush1.msra.mxu0 0.0
      %423 = vmatprep.subr.mxu0 0.0
      %424 = vmatpush1.msra.mxu0 0.0
      %425 = vmatprep.subr.mxu0 0.0
      %426 = vmatpush1.msra.mxu0 0.0
      %427 = vmatprep.subr.mxu0 0.0
      %428 = vmatpush1.msra.mxu0 0.0
      %429 = vmatprep.subr.mxu0 0.0
      %430 = vmatpush1.msra.mxu0 0.0
      %431 = vmatprep.subr.mxu0 0.0
      %432 = vmatpush1.msra.mxu0 0.0
      %433 = vmatprep.subr.mxu0 0.0
      %434 = vmatpush1.msra.mxu0 0.0
      %435 = vmatprep.subr.mxu0 0.0
      %436 = vmatpush1.msra.mxu0 0.0
      %437 = vmatprep.subr.mxu0 0.0
      %438 = vmatpush1.msra.mxu0 0.0
      %439 = vmatprep.subr.mxu0 0.0
      %440 = vmatpush1.msra.mxu0 0.0
      %441 = vmatprep.subr.mxu0 0.0
      %442 = vmatpush1.msra.mxu0 0.0
      %443 = vmatprep.subr.mxu0 0.0
      %444 = vmatpush1.msra.mxu0 0.0
      %445 = vmatprep.subr.mxu0 0.0
      %446 = vmatpush1.msra.mxu0 0.0
      %447 = vmatprep.subr.mxu0 0.0
      %448 = vmatpush1.msra.mxu0 0.0
      %449 = vmatprep.subr.mxu0 0.0
      %450 = vmatpush1.msra.mxu0 0.0
      %451 = vmatprep.subr.mxu0 0.0
      %452 = vmatpush1.msra.mxu0 0.0
      %453 = vmatprep.mubr.f32.mxu0 0.0
      %454 = vmatmul.mubr.f32.gmra.mrb[0].mxu0 %v361
      %v455 = vpop.f32.mrb[0].mxu0
      %v456 = vadd.f32 %v320, %v455
      %v457 = vpop.f32.mrb[0].mxu0
      %v458 = vadd.f32 %v320, %v457
      %459 = vmatprep.mubr.f32.mxu0 0.0
      %460 = vmatmul.mubr.f32.gmra.mrb[0].mxu0 %v364
      %v461 = vpop.f32.mrb[0].mxu0
      %v462 = vadd.f32 %v325, %v461
      %v463 = vpop.f32.mrb[0].mxu0
      %v464 = vadd.f32 %v325, %v463
      %465 = vmatprep.mubr.f32.mxu0 0.0
      %466 = vmatmul.mubr.f32.gmra.mrb[0].mxu0 %v367
      %v467 = vpop.f32.mrb[0].mxu0
      %v468 = vadd.f32 %v330, %v467
      %v469 = vpop.f32.mrb[0].mxu0
      %v470 = vadd.f32 %v330, %v469
      %471 = vmatprep.mubr.f32.mxu0 0.0
      %472 = vmatmul.mubr.f32.gmra.mrb[0].mxu0 %v370
      %v473 = vpop.f32.mrb[0].mxu0
      %v474 = vadd.f32 %v335, %v473
      %v475 = vpop.f32.mrb[0].mxu0
      %v476 = vadd.f32 %v335, %v475
      %477 = vmatprep.mubr.f32.mxu0 0.0
      %478 = vmatmul.mubr.f32.gmra.mrb[0].mxu0 %v373
      %v479 = vpop.f32.mrb[0].mxu0
      %v480 = vadd.f32 %v340, %v479
      %v481 = vpop.f32.mrb[0].mxu0
      %v482 = vadd.f32 %v340, %v481
      %483 = vmatprep.mubr.f32.mxu0 0.0
      %484 = vmatmul.mubr.f32.gmra.mrb[0].mxu0 %v376
      %v485 = vpop.f32.mrb[0].mxu0
      %v486 = vadd.f32 %v345, %v485
      %v487 = vpop.f32.mrb[0].mxu0
      %v488 = vadd.f32 %v345, %v487
      %489 = vmatprep.mubr.f32.mxu0 0.0
      %490 = vmatmul.mubr.f32.gmra.mrb[0].mxu0 %v379
      %v491 = vpop.f32.mrb[0].mxu0
      %v492 = vadd.f32 %v350, %v491
      %v493 = vpop.f32.mrb[0].mxu0
      %v494 = vadd.f32 %v350, %v493
      %495 = vmatprep.mubr.f32.mxu0 0.0
      %496 = vmatmul.mubr.f32.gmra.mrb[0].mxu0 %v382
      %v497 = vpop.f32.mrb[0].mxu0
      %v498 = vadd.f32 %v355, %v497
      %v499 = vpop.f32.mrb[0].mxu0
      %v500 = vadd.f32 %v355, %v499
      %501 = vdwg.mxu0
      %v502 = vmul.f32 %v456, 100.0
      %v503 = vmul.f32 %v458, 100.0
      %v504 = vmul.f32 %v462, 100.0
      %v505 = vmul.f32 %v464, 100.0
      %v506 = vmul.f32 %v468, 100.0
      %v507 = vmul.f32 %v470, 100.0
      %v508 = vmul.f32 %v474, 100.0
      %v509 = vmul.f32 %v476, 100.0
      %v510 = vmul.f32 %v480, 100.0
      %v511 = vmul.f32 %v482, 100.0
      %v512 = vmul.f32 %v486, 100.0
      %v513 = vmul.f32 %v488, 100.0
      %v514 = vmul.f32 %v492, 100.0
      %v515 = vmul.f32 %v494, 100.0
      %v516 = vmul.f32 %v498, 100.0
      %v517 = vmul.f32 %v500, 100.0
      %v518 = vmin.f32 %v502, 20.0
      %v519 = vmin.f32 %v503, 20.0
      %v520 = vmin.f32 %v504, 20.0
      %v521 = vmin.f32 %v505, 20.0
      %v522 = vmin.f32 %v506, 20.0
      %v523 = vmin.f32 %v507, 20.0
      %v524 = vmin.f32 %v508, 20.0
      %v525 = vmin.f32 %v509, 20.0
      %v526 = vmin.f32 %v510, 20.0
      %v527 = vmin.f32 %v511, 20.0
      %v528 = vmin.f32 %v512, 20.0
      %v529 = vmin.f32 %v513, 20.0
      %v530 = vmin.f32 %v514, 20.0
      %v531 = vmin.f32 %v515, 20.0
      %v532 = vmin.f32 %v516, 20.0
      %v533 = vmin.f32 %v517, 20.0
      %v534 = vmul.f32 %v518, 1.442695
      %v535 = vpow.pop %v534
      %v536 = vmul.f32 %v519, 1.442695
      %v537 = vpow.pop %v536
      %v538 = vmul.f32 %v520, 1.442695
      %v539 = vpow.pop %v538
      %v540 = vmul.f32 %v521, 1.442695
      %v541 = vpow.pop %v540
      %v542 = vmul.f32 %v522, 1.442695
      %v543 = vpow.pop %v542
      %v544 = vmul.f32 %v523, 1.442695
      %v545 = vpow.pop %v544
      %v546 = vmul.f32 %v524, 1.442695
      %v547 = vpow.pop %v546
      %v548 = vmul.f32 %v525, 1.442695
      %v549 = vpow.pop %v548
      %v550 = vmul.f32 %v526, 1.442695
      %v551 = vpow.pop %v550
      %v552 = vmul.f32 %v527, 1.442695
      %v553 = vpow.pop %v552
      %v554 = vmul.f32 %v528, 1.442695
      %v555 = vpow.pop %v554
      %v556 = vmul.f32 %v529, 1.442695
      %v557 = vpow.pop %v556
      %v558 = vmul.f32 %v530, 1.442695
      %v559 = vpow.pop %v558
      %v560 = vmul.f32 %v531, 1.442695
      %v561 = vpow.pop %v560
      %v562 = vmul.f32 %v532, 1.442695
      %v563 = vpow.pop %v562
      %v564 = vmul.f32 %v533, 1.442695
      %v565 = vpow.pop %v564
      %v566 = vadd.f32 %v535, 1.0
      %v567 = vlog2.pop %v566
      %v568 = vmul.f32 %v567, 0.6931472
      %v569 = vmul.f32 -0.5, %v535
      %v570 = vadd.f32 %v569, 1.0
      %v571 = vmul.f32 %v570, %v535
      %v572 = vand.u32 2147483647, %v535
      %vm573 = vcmp.lt.f32.partialorder %v572, 0.0004427343
      %v574 = vsel %vm573, %v571, %v568
      %v575 = vadd.f32 %v537, 1.0
      %v576 = vlog2.pop %v575
      %v577 = vmul.f32 %v576, 0.6931472
      %v578 = vmul.f32 -0.5, %v537
      %v579 = vadd.f32 %v578, 1.0
      %v580 = vmul.f32 %v579, %v537
      %v581 = vand.u32 2147483647, %v537
      %vm582 = vcmp.lt.f32.partialorder %v581, 0.0004427343
      %v583 = vsel %vm582, %v580, %v577
      %v584 = vadd.f32 %v539, 1.0
      %v585 = vlog2.pop %v584
      %v586 = vmul.f32 %v585, 0.6931472
      %v587 = vmul.f32 -0.5, %v539
      %v588 = vadd.f32 %v587, 1.0
      %v589 = vmul.f32 %v588, %v539
      %v590 = vand.u32 2147483647, %v539
      %vm591 = vcmp.lt.f32.partialorder %v590, 0.0004427343
      %v592 = vsel %vm591, %v589, %v586
      %v593 = vadd.f32 %v541, 1.0
      %v594 = vlog2.pop %v593
      %v595 = vmul.f32 %v594, 0.6931472
      %v596 = vmul.f32 -0.5, %v541
      %v597 = vadd.f32 %v596, 1.0
      %v598 = vmul.f32 %v597, %v541
      %v599 = vand.u32 2147483647, %v541
      %vm600 = vcmp.lt.f32.partialorder %v599, 0.0004427343
      %v601 = vsel %vm600, %v598, %v595
      %v602 = vadd.f32 %v543, 1.0
      %v603 = vlog2.pop %v602
      %v604 = vmul.f32 %v603, 0.6931472
      %v605 = vmul.f32 -0.5, %v543
      %v606 = vadd.f32 %v605, 1.0
      %v607 = vmul.f32 %v606, %v543
      %v608 = vand.u32 2147483647, %v543
      %vm609 = vcmp.lt.f32.partialorder %v608, 0.0004427343
      %v610 = vsel %vm609, %v607, %v604
      %v611 = vadd.f32 %v545, 1.0
      %v612 = vlog2.pop %v611
      %v613 = vmul.f32 %v612, 0.6931472
      %v614 = vmul.f32 -0.5, %v545
      %v615 = vadd.f32 %v614, 1.0
      %v616 = vmul.f32 %v615, %v545
      %v617 = vand.u32 2147483647, %v545
      %vm618 = vcmp.lt.f32.partialorder %v617, 0.0004427343
      %v619 = vsel %vm618, %v616, %v613
      %v620 = vadd.f32 %v547, 1.0
      %v621 = vlog2.pop %v620
      %v622 = vmul.f32 %v621, 0.6931472
      %v623 = vmul.f32 -0.5, %v547
      %v624 = vadd.f32 %v623, 1.0
      %v625 = vmul.f32 %v624, %v547
      %v626 = vand.u32 2147483647, %v547
      %vm627 = vcmp.lt.f32.partialorder %v626, 0.0004427343
      %v628 = vsel %vm627, %v625, %v622
      %v629 = vadd.f32 %v549, 1.0
      %v630 = vlog2.pop %v629
      %v631 = vmul.f32 %v630, 0.6931472
      %v632 = vmul.f32 -0.5, %v549
      %v633 = vadd.f32 %v632, 1.0
      %v634 = vmul.f32 %v633, %v549
      %v635 = vand.u32 2147483647, %v549
      %vm636 = vcmp.lt.f32.partialorder %v635, 0.0004427343
      %v637 = vsel %vm636, %v634, %v631
      %v638 = vadd.f32 %v551, 1.0
      %v639 = vlog2.pop %v638
      %v640 = vmul.f32 %v639, 0.6931472
      %v641 = vmul.f32 -0.5, %v551
      %v642 = vadd.f32 %v641, 1.0
      %v643 = vmul.f32 %v642, %v551
      %v644 = vand.u32 2147483647, %v551
      %vm645 = vcmp.lt.f32.partialorder %v644, 0.0004427343
      %v646 = vsel %vm645, %v643, %v640
      %v647 = vadd.f32 %v553, 1.0
      %v648 = vlog2.pop %v647
      %v649 = vmul.f32 %v648, 0.6931472
      %v650 = vmul.f32 -0.5, %v553
      %v651 = vadd.f32 %v650, 1.0
      %v652 = vmul.f32 %v651, %v553
      %v653 = vand.u32 2147483647, %v553
      %vm654 = vcmp.lt.f32.partialorder %v653, 0.0004427343
      %v655 = vsel %vm654, %v652, %v649
      %v656 = vadd.f32 %v555, 1.0
      %v657 = vlog2.pop %v656
      %v658 = vmul.f32 %v657, 0.6931472
      %v659 = vmul.f32 -0.5, %v555
      %v660 = vadd.f32 %v659, 1.0
      %v661 = vmul.f32 %v660, %v555
      %v662 = vand.u32 2147483647, %v555
      %vm663 = vcmp.lt.f32.partialorder %v662, 0.0004427343
      %v664 = vsel %vm663, %v661, %v658
      %v665 = vadd.f32 %v557, 1.0
      %v666 = vlog2.pop %v665
      %v667 = vmul.f32 %v666, 0.6931472
      %v668 = vmul.f32 -0.5, %v557
      %v669 = vadd.f32 %v668, 1.0
      %v670 = vmul.f32 %v669, %v557
      %v671 = vand.u32 2147483647, %v557
      %vm672 = vcmp.lt.f32.partialorder %v671, 0.0004427343
      %v673 = vsel %vm672, %v670, %v667
      %v674 = vadd.f32 %v559, 1.0
      %v675 = vlog2.pop %v674
      %v676 = vmul.f32 %v675, 0.6931472
      %v677 = vmul.f32 -0.5, %v559
      %v678 = vadd.f32 %v677, 1.0
      %v679 = vmul.f32 %v678, %v559
      %v680 = vand.u32 2147483647, %v559
      %vm681 = vcmp.lt.f32.partialorder %v680, 0.0004427343
      %v682 = vsel %vm681, %v679, %v676
      %v683 = vadd.f32 %v561, 1.0
      %v684 = vlog2.pop %v683
      %v685 = vmul.f32 %v684, 0.6931472
      %v686 = vmul.f32 -0.5, %v561
      %v687 = vadd.f32 %v686, 1.0
      %v688 = vmul.f32 %v687, %v561
      %v689 = vand.u32 2147483647, %v561
      %vm690 = vcmp.lt.f32.partialorder %v689, 0.0004427343
      %v691 = vsel %vm690, %v688, %v685
      %v692 = vadd.f32 %v563, 1.0
      %v693 = vlog2.pop %v692
      %v694 = vmul.f32 %v693, 0.6931472
      %v695 = vmul.f32 -0.5, %v563
      %v696 = vadd.f32 %v695, 1.0
      %v697 = vmul.f32 %v696, %v563
      %v698 = vand.u32 2147483647, %v563
      %vm699 = vcmp.lt.f32.partialorder %v698, 0.0004427343
      %v700 = vsel %vm699, %v697, %v694
      %v701 = vadd.f32 %v565, 1.0
      %v702 = vlog2.pop %v701
      %v703 = vmul.f32 %v702, 0.6931472
      %v704 = vmul.f32 -0.5, %v565
      %v705 = vadd.f32 %v704, 1.0
      %v706 = vmul.f32 %v705, %v565
      %v707 = vand.u32 2147483647, %v565
      %vm708 = vcmp.lt.f32.partialorder %v707, 0.0004427343
      %v709 = vsel %vm708, %v706, %v703
      %v710 = vmul.f32 %v574, 0.01
      %v711 = vmul.f32 %v583, 0.01
      %v712 = vmul.f32 %v592, 0.01
      %v713 = vmul.f32 %v601, 0.01
      %v714 = vmul.f32 %v610, 0.01
      %v715 = vmul.f32 %v619, 0.01
      %v716 = vmul.f32 %v628, 0.01
      %v717 = vmul.f32 %v637, 0.01
      %v718 = vmul.f32 %v646, 0.01
      %v719 = vmul.f32 %v655, 0.01
      %v720 = vmul.f32 %v664, 0.01
      %v721 = vmul.f32 %v673, 0.01
      %v722 = vmul.f32 %v682, 0.01
      %v723 = vmul.f32 %v691, 0.01
      %v724 = vmul.f32 %v700, 0.01
      %v725 = vmul.f32 %v709, 0.01
      %vm726 = vcmp.gt.f32.partialorder %v502, 20.0
      %vm727 = vcmp.gt.f32.partialorder %v503, 20.0
      %vm728 = vcmp.gt.f32.partialorder %v504, 20.0
      %vm729 = vcmp.gt.f32.partialorder %v505, 20.0
      %vm730 = vcmp.gt.f32.partialorder %v506, 20.0
      %vm731 = vcmp.gt.f32.partialorder %v507, 20.0
      %vm732 = vcmp.gt.f32.partialorder %v508, 20.0
      %vm733 = vcmp.gt.f32.partialorder %v509, 20.0
      %vm734 = vcmp.gt.f32.partialorder %v510, 20.0
      %vm735 = vcmp.gt.f32.partialorder %v511, 20.0
      %vm736 = vcmp.gt.f32.partialorder %v512, 20.0
      %vm737 = vcmp.gt.f32.partialorder %v513, 20.0
      %vm738 = vcmp.gt.f32.partialorder %v514, 20.0
      %vm739 = vcmp.gt.f32.partialorder %v515, 20.0
      %vm740 = vcmp.gt.f32.partialorder %v516, 20.0
      %vm741 = vcmp.gt.f32.partialorder %v517, 20.0
      %v742 = vsel %vm726, %v456, %v710
      %v743 = vsel %vm727, %v458, %v711
      %v744 = vsel %vm728, %v462, %v712
      %v745 = vsel %vm729, %v464, %v713
      %v746 = vsel %vm730, %v468, %v714
      %v747 = vsel %vm731, %v470, %v715
      %v748 = vsel %vm732, %v474, %v716
      %v749 = vsel %vm733, %v476, %v717
      %v750 = vsel %vm734, %v480, %v718
      %v751 = vsel %vm735, %v482, %v719
      %v752 = vsel %vm736, %v486, %v720
      %v753 = vsel %vm737, %v488, %v721
      %v754 = vsel %vm738, %v492, %v722
      %v755 = vsel %vm739, %v494, %v723
      %v756 = vsel %vm740, %v498, %v724
      %v757 = vsel %vm741, %v500, %v725
      %759 = vset.pattern.permute.xlu0 0
      %760 = vperm.xlu0 %759, %v307
      %v761 = vpop.permute.xlu0 %760
      %764 = vset.pattern.permute.xlu0 0
      %765 = vperm.xlu0 %764, %v308
      %v766 = vpop.permute.xlu0 %765
      %769 = vset.pattern.permute.xlu0 0
      %770 = vperm.xlu0 %769, %v309
      %v771 = vpop.permute.xlu0 %770
      %774 = vset.pattern.permute.xlu0 0
      %775 = vperm.xlu0 %774, %v310
      %v776 = vpop.permute.xlu0 %775
      %779 = vset.pattern.permute.xlu0 0
      %780 = vperm.xlu0 %779, %v311
      %v781 = vpop.permute.xlu0 %780
      %784 = vset.pattern.permute.xlu0 0
      %785 = vperm.xlu0 %784, %v312
      %v786 = vpop.permute.xlu0 %785
      %789 = vset.pattern.permute.xlu0 0
      %790 = vperm.xlu0 %789, %v313
      %v791 = vpop.permute.xlu0 %790
      %794 = vset.pattern.permute.xlu0 0
      %795 = vperm.xlu0 %794, %v314
      %v796 = vpop.permute.xlu0 %795
      %vm798 = vcmask 523264
      %v800 = vsel %vm798, %v290, 0
      %v803 = vsel %vm798, %v291, 0
      %v806 = vsel %vm798, %v292, 0
      %v809 = vsel %vm798, %v293, 0
      %v812 = vsel %vm798, %v294, 0
      %v815 = vsel %vm798, %v295, 0
      %v818 = vsel %vm798, %v296, 0
      %v821 = vsel %vm798, %v297, 0
      %823 = vmatprep.subr.mxu0 %v743
      %824 = vmatpush1.msra.mxu0 %v742
      %825 = vmatprep.subr.mxu0 %v745
      %826 = vmatpush1.msra.mxu0 %v744
      %827 = vmatprep.subr.mxu0 %v747
      %828 = vmatpush1.msra.mxu0 %v746
      %829 = vmatprep.subr.mxu0 %v749
      %830 = vmatpush1.msra.mxu0 %v748
      %831 = vmatprep.subr.mxu0 %v751
      %832 = vmatpush1.msra.mxu0 %v750
      %833 = vmatprep.subr.mxu0 %v753
      %834 = vmatpush1.msra.mxu0 %v752
      %835 = vmatprep.subr.mxu0 %v755
      %836 = vmatpush1.msra.mxu0 %v754
      %837 = vmatprep.subr.mxu0 %v757
      %838 = vmatpush1.msra.mxu0 %v756
      %839 = vmatprep.subr.mxu0 0.0
      %840 = vmatpush1.msra.mxu0 0.0
      %841 = vmatprep.subr.mxu0 0.0
      %842 = vmatpush1.msra.mxu0 0.0
      %843 = vmatprep.subr.mxu0 0.0
      %844 = vmatpush1.msra.mxu0 0.0
      %845 = vmatprep.subr.mxu0 0.0
      %846 = vmatpush1.msra.mxu0 0.0
      %847 = vmatprep.subr.mxu0 0.0
      %848 = vmatpush1.msra.mxu0 0.0
      %849 = vmatprep.subr.mxu0 0.0
      %850 = vmatpush1.msra.mxu0 0.0
      %851 = vmatprep.subr.mxu0 0.0
      %852 = vmatpush1.msra.mxu0 0.0
      %853 = vmatprep.subr.mxu0 0.0
      %854 = vmatpush1.msra.mxu0 0.0
      %855 = vmatprep.subr.mxu0 0.0
      %856 = vmatpush1.msra.mxu0 0.0
      %857 = vmatprep.subr.mxu0 0.0
      %858 = vmatpush1.msra.mxu0 0.0
      %859 = vmatprep.subr.mxu0 0.0
      %860 = vmatpush1.msra.mxu0 0.0
      %861 = vmatprep.subr.mxu0 0.0
      %862 = vmatpush1.msra.mxu0 0.0
      %863 = vmatprep.subr.mxu0 0.0
      %864 = vmatpush1.msra.mxu0 0.0
      %865 = vmatprep.subr.mxu0 0.0
      %866 = vmatpush1.msra.mxu0 0.0
      %867 = vmatprep.subr.mxu0 0.0
      %868 = vmatpush1.msra.mxu0 0.0
      %869 = vmatprep.subr.mxu0 0.0
      %870 = vmatpush1.msra.mxu0 0.0
      %871 = vmatprep.subr.mxu0 0.0
      %872 = vmatpush1.msra.mxu0 0.0
      %873 = vmatprep.subr.mxu0 0.0
      %874 = vmatpush1.msra.mxu0 0.0
      %875 = vmatprep.subr.mxu0 0.0
      %876 = vmatpush1.msra.mxu0 0.0
      %877 = vmatprep.subr.mxu0 0.0
      %878 = vmatpush1.msra.mxu0 0.0
      %879 = vmatprep.subr.mxu0 0.0
      %880 = vmatpush1.msra.mxu0 0.0
      %881 = vmatprep.subr.mxu0 0.0
      %882 = vmatpush1.msra.mxu0 0.0
      %883 = vmatprep.subr.mxu0 0.0
      %884 = vmatpush1.msra.mxu0 0.0
      %885 = vmatprep.subr.mxu0 0.0
      %886 = vmatpush1.msra.mxu0 0.0
      %887 = vmatprep.mubr.f32.mxu0 0.0
      %888 = vmatmul.mubr.f32.gmra.mrb[0].mxu0 %v800
      %v889 = vpop.f32.mrb[0].mxu0
      %v890 = vadd.f32 %v761, %v889
      %v891 = vpop.f32.mrb[0].mxu0
      %v892 = vadd.f32 %v761, %v891
      %893 = vmatprep.mubr.f32.mxu0 0.0
      %894 = vmatmul.mubr.f32.gmra.mrb[0].mxu0 %v803
      %v895 = vpop.f32.mrb[0].mxu0
      %v896 = vadd.f32 %v766, %v895
      %v897 = vpop.f32.mrb[0].mxu0
      %v898 = vadd.f32 %v766, %v897
      %899 = vmatprep.mubr.f32.mxu0 0.0
      %900 = vmatmul.mubr.f32.gmra.mrb[0].mxu0 %v806
      %v901 = vpop.f32.mrb[0].mxu0
      %v902 = vadd.f32 %v771, %v901
      %v903 = vpop.f32.mrb[0].mxu0
      %v904 = vadd.f32 %v771, %v903
      %905 = vmatprep.mubr.f32.mxu0 0.0
      %906 = vmatmul.mubr.f32.gmra.mrb[0].mxu0 %v809
      %v907 = vpop.f32.mrb[0].mxu0
      %v908 = vadd.f32 %v776, %v907
      %v909 = vpop.f32.mrb[0].mxu0
      %v910 = vadd.f32 %v776, %v909
      %911 = vmatprep.mubr.f32.mxu0 0.0
      %912 = vmatmul.mubr.f32.gmra.mrb[0].mxu0 %v812
      %v913 = vpop.f32.mrb[0].mxu0
      %v914 = vadd.f32 %v781, %v913
      %v915 = vpop.f32.mrb[0].mxu0
      %v916 = vadd.f32 %v781, %v915
      %917 = vmatprep.mubr.f32.mxu0 0.0
      %918 = vmatmul.mubr.f32.gmra.mrb[0].mxu0 %v815
      %v919 = vpop.f32.mrb[0].mxu0
      %v920 = vadd.f32 %v786, %v919
      %v921 = vpop.f32.mrb[0].mxu0
      %v922 = vadd.f32 %v786, %v921
      %923 = vmatprep.mubr.f32.mxu0 0.0
      %924 = vmatmul.mubr.f32.gmra.mrb[0].mxu0 %v818
      %v925 = vpop.f32.mrb[0].mxu0
      %v926 = vadd.f32 %v791, %v925
      %v927 = vpop.f32.mrb[0].mxu0
      %v928 = vadd.f32 %v791, %v927
      %929 = vmatprep.mubr.f32.mxu0 0.0
      %930 = vmatmul.mubr.f32.gmra.mrb[0].mxu0 %v821
      %v931 = vpop.f32.mrb[0].mxu0
      %v932 = vadd.f32 %v796, %v931
      %v933 = vpop.f32.mrb[0].mxu0
      %v934 = vadd.f32 %v796, %v933
      %935 = vdwg.mxu0
      %v936 = vmul.f32 %v890, 100.0
      %v937 = vmul.f32 %v892, 100.0
      %v938 = vmul.f32 %v896, 100.0
      %v939 = vmul.f32 %v898, 100.0
      %v940 = vmul.f32 %v902, 100.0
      %v941 = vmul.f32 %v904, 100.0
      %v942 = vmul.f32 %v908, 100.0
      %v943 = vmul.f32 %v910, 100.0
      %v944 = vmul.f32 %v914, 100.0
      %v945 = vmul.f32 %v916, 100.0
      %v946 = vmul.f32 %v920, 100.0
      %v947 = vmul.f32 %v922, 100.0
      %v948 = vmul.f32 %v926, 100.0
      %v949 = vmul.f32 %v928, 100.0
      %v950 = vmul.f32 %v932, 100.0
      %v951 = vmul.f32 %v934, 100.0
      %v952 = vmin.f32 %v936, 20.0
      %v953 = vmin.f32 %v937, 20.0
      %v954 = vmin.f32 %v938, 20.0
      %v955 = vmin.f32 %v939, 20.0
      %v956 = vmin.f32 %v940, 20.0
      %v957 = vmin.f32 %v941, 20.0
      %v958 = vmin.f32 %v942, 20.0
      %v959 = vmin.f32 %v943, 20.0
      %v960 = vmin.f32 %v944, 20.0
      %v961 = vmin.f32 %v945, 20.0
      %v962 = vmin.f32 %v946, 20.0
      %v963 = vmin.f32 %v947, 20.0
      %v964 = vmin.f32 %v948, 20.0
      %v965 = vmin.f32 %v949, 20.0
      %v966 = vmin.f32 %v950, 20.0
      %v967 = vmin.f32 %v951, 20.0
      %v968 = vmul.f32 %v952, 1.442695
      %v969 = vpow.pop %v968
      %v970 = vmul.f32 %v953, 1.442695
      %v971 = vpow.pop %v970
      %v972 = vmul.f32 %v954, 1.442695
      %v973 = vpow.pop %v972
      %v974 = vmul.f32 %v955, 1.442695
      %v975 = vpow.pop %v974
      %v976 = vmul.f32 %v956, 1.442695
      %v977 = vpow.pop %v976
      %v978 = vmul.f32 %v957, 1.442695
      %v979 = vpow.pop %v978
      %v980 = vmul.f32 %v958, 1.442695
      %v981 = vpow.pop %v980
      %v982 = vmul.f32 %v959, 1.442695
      %v983 = vpow.pop %v982
      %v984 = vmul.f32 %v960, 1.442695
      %v985 = vpow.pop %v984
      %v986 = vmul.f32 %v961, 1.442695
      %v987 = vpow.pop %v986
      %v988 = vmul.f32 %v962, 1.442695
      %v989 = vpow.pop %v988
      %v990 = vmul.f32 %v963, 1.442695
      %v991 = vpow.pop %v990
      %v992 = vmul.f32 %v964, 1.442695
      %v993 = vpow.pop %v992
      %v994 = vmul.f32 %v965, 1.442695
      %v995 = vpow.pop %v994
      %v996 = vmul.f32 %v966, 1.442695
      %v997 = vpow.pop %v996
      %v998 = vmul.f32 %v967, 1.442695
      %v999 = vpow.pop %v998
      %v1000 = vadd.f32 %v969, 1.0
      %v1001 = vlog2.pop %v1000
      %v1002 = vmul.f32 %v1001, 0.6931472
      %v1003 = vmul.f32 -0.5, %v969
      %v1004 = vadd.f32 %v1003, 1.0
      %v1005 = vmul.f32 %v1004, %v969
      %v1006 = vand.u32 2147483647, %v969
      %vm1007 = vcmp.lt.f32.partialorder %v1006, 0.0004427343
      %v1008 = vsel %vm1007, %v1005, %v1002
      %v1009 = vadd.f32 %v971, 1.0
      %v1010 = vlog2.pop %v1009
      %v1011 = vmul.f32 %v1010, 0.6931472
      %v1012 = vmul.f32 -0.5, %v971
      %v1013 = vadd.f32 %v1012, 1.0
      %v1014 = vmul.f32 %v1013, %v971
      %v1015 = vand.u32 2147483647, %v971
      %vm1016 = vcmp.lt.f32.partialorder %v1015, 0.0004427343
      %v1017 = vsel %vm1016, %v1014, %v1011
      %v1018 = vadd.f32 %v973, 1.0
      %v1019 = vlog2.pop %v1018
      %v1020 = vmul.f32 %v1019, 0.6931472
      %v1021 = vmul.f32 -0.5, %v973
      %v1022 = vadd.f32 %v1021, 1.0
      %v1023 = vmul.f32 %v1022, %v973
      %v1024 = vand.u32 2147483647, %v973
      %vm1025 = vcmp.lt.f32.partialorder %v1024, 0.0004427343
      %v1026 = vsel %vm1025, %v1023, %v1020
      %v1027 = vadd.f32 %v975, 1.0
      %v1028 = vlog2.pop %v1027
      %v1029 = vmul.f32 %v1028, 0.6931472
      %v1030 = vmul.f32 -0.5, %v975
      %v1031 = vadd.f32 %v1030, 1.0
      %v1032 = vmul.f32 %v1031, %v975
      %v1033 = vand.u32 2147483647, %v975
      %vm1034 = vcmp.lt.f32.partialorder %v1033, 0.0004427343
      %v1035 = vsel %vm1034, %v1032, %v1029
      %v1036 = vadd.f32 %v977, 1.0
      %v1037 = vlog2.pop %v1036
      %v1038 = vmul.f32 %v1037, 0.6931472
      %v1039 = vmul.f32 -0.5, %v977
      %v1040 = vadd.f32 %v1039, 1.0
      %v1041 = vmul.f32 %v1040, %v977
      %v1042 = vand.u32 2147483647, %v977
      %vm1043 = vcmp.lt.f32.partialorder %v1042, 0.0004427343
      %v1044 = vsel %vm1043, %v1041, %v1038
      %v1045 = vadd.f32 %v979, 1.0
      %v1046 = vlog2.pop %v1045
      %v1047 = vmul.f32 %v1046, 0.6931472
      %v1048 = vmul.f32 -0.5, %v979
      %v1049 = vadd.f32 %v1048, 1.0
      %v1050 = vmul.f32 %v1049, %v979
      %v1051 = vand.u32 2147483647, %v979
      %vm1052 = vcmp.lt.f32.partialorder %v1051, 0.0004427343
      %v1053 = vsel %vm1052, %v1050, %v1047
      %v1054 = vadd.f32 %v981, 1.0
      %v1055 = vlog2.pop %v1054
      %v1056 = vmul.f32 %v1055, 0.6931472
      %v1057 = vmul.f32 -0.5, %v981
      %v1058 = vadd.f32 %v1057, 1.0
      %v1059 = vmul.f32 %v1058, %v981
      %v1060 = vand.u32 2147483647, %v981
      %vm1061 = vcmp.lt.f32.partialorder %v1060, 0.0004427343
      %v1062 = vsel %vm1061, %v1059, %v1056
      %v1063 = vadd.f32 %v983, 1.0
      %v1064 = vlog2.pop %v1063
      %v1065 = vmul.f32 %v1064, 0.6931472
      %v1066 = vmul.f32 -0.5, %v983
      %v1067 = vadd.f32 %v1066, 1.0
      %v1068 = vmul.f32 %v1067, %v983
      %v1069 = vand.u32 2147483647, %v983
      %vm1070 = vcmp.lt.f32.partialorder %v1069, 0.0004427343
      %v1071 = vsel %vm1070, %v1068, %v1065
      %v1072 = vadd.f32 %v985, 1.0
      %v1073 = vlog2.pop %v1072
      %v1074 = vmul.f32 %v1073, 0.6931472
      %v1075 = vmul.f32 -0.5, %v985
      %v1076 = vadd.f32 %v1075, 1.0
      %v1077 = vmul.f32 %v1076, %v985
      %v1078 = vand.u32 2147483647, %v985
      %vm1079 = vcmp.lt.f32.partialorder %v1078, 0.0004427343
      %v1080 = vsel %vm1079, %v1077, %v1074
      %v1081 = vadd.f32 %v987, 1.0
      %v1082 = vlog2.pop %v1081
      %v1083 = vmul.f32 %v1082, 0.6931472
      %v1084 = vmul.f32 -0.5, %v987
      %v1085 = vadd.f32 %v1084, 1.0
      %v1086 = vmul.f32 %v1085, %v987
      %v1087 = vand.u32 2147483647, %v987
      %vm1088 = vcmp.lt.f32.partialorder %v1087, 0.0004427343
      %v1089 = vsel %vm1088, %v1086, %v1083
      %v1090 = vadd.f32 %v989, 1.0
      %v1091 = vlog2.pop %v1090
      %v1092 = vmul.f32 %v1091, 0.6931472
      %v1093 = vmul.f32 -0.5, %v989
      %v1094 = vadd.f32 %v1093, 1.0
      %v1095 = vmul.f32 %v1094, %v989
      %v1096 = vand.u32 2147483647, %v989
      %vm1097 = vcmp.lt.f32.partialorder %v1096, 0.0004427343
      %v1098 = vsel %vm1097, %v1095, %v1092
      %v1099 = vadd.f32 %v991, 1.0
      %v1100 = vlog2.pop %v1099
      %v1101 = vmul.f32 %v1100, 0.6931472
      %v1102 = vmul.f32 -0.5, %v991
      %v1103 = vadd.f32 %v1102, 1.0
      %v1104 = vmul.f32 %v1103, %v991
      %v1105 = vand.u32 2147483647, %v991
      %vm1106 = vcmp.lt.f32.partialorder %v1105, 0.0004427343
      %v1107 = vsel %vm1106, %v1104, %v1101
      %v1108 = vadd.f32 %v993, 1.0
      %v1109 = vlog2.pop %v1108
      %v1110 = vmul.f32 %v1109, 0.6931472
      %v1111 = vmul.f32 -0.5, %v993
      %v1112 = vadd.f32 %v1111, 1.0
      %v1113 = vmul.f32 %v1112, %v993
      %v1114 = vand.u32 2147483647, %v993
      %vm1115 = vcmp.lt.f32.partialorder %v1114, 0.0004427343
      %v1116 = vsel %vm1115, %v1113, %v1110
      %v1117 = vadd.f32 %v995, 1.0
      %v1118 = vlog2.pop %v1117
      %v1119 = vmul.f32 %v1118, 0.6931472
      %v1120 = vmul.f32 -0.5, %v995
      %v1121 = vadd.f32 %v1120, 1.0
      %v1122 = vmul.f32 %v1121, %v995
      %v1123 = vand.u32 2147483647, %v995
      %vm1124 = vcmp.lt.f32.partialorder %v1123, 0.0004427343
      %v1125 = vsel %vm1124, %v1122, %v1119
      %v1126 = vadd.f32 %v997, 1.0
      %v1127 = vlog2.pop %v1126
      %v1128 = vmul.f32 %v1127, 0.6931472
      %v1129 = vmul.f32 -0.5, %v997
      %v1130 = vadd.f32 %v1129, 1.0
      %v1131 = vmul.f32 %v1130, %v997
      %v1132 = vand.u32 2147483647, %v997
      %vm1133 = vcmp.lt.f32.partialorder %v1132, 0.0004427343
      %v1134 = vsel %vm1133, %v1131, %v1128
      %v1135 = vadd.f32 %v999, 1.0
      %v1136 = vlog2.pop %v1135
      %v1137 = vmul.f32 %v1136, 0.6931472
      %v1138 = vmul.f32 -0.5, %v999
      %v1139 = vadd.f32 %v1138, 1.0
      %v1140 = vmul.f32 %v1139, %v999
      %v1141 = vand.u32 2147483647, %v999
      %vm1142 = vcmp.lt.f32.partialorder %v1141, 0.0004427343
      %v1143 = vsel %vm1142, %v1140, %v1137
      %v1144 = vmul.f32 %v1008, 0.01
      %v1145 = vmul.f32 %v1017, 0.01
      %v1146 = vmul.f32 %v1026, 0.01
      %v1147 = vmul.f32 %v1035, 0.01
      %v1148 = vmul.f32 %v1044, 0.01
      %v1149 = vmul.f32 %v1053, 0.01
      %v1150 = vmul.f32 %v1062, 0.01
      %v1151 = vmul.f32 %v1071, 0.01
      %v1152 = vmul.f32 %v1080, 0.01
      %v1153 = vmul.f32 %v1089, 0.01
      %v1154 = vmul.f32 %v1098, 0.01
      %v1155 = vmul.f32 %v1107, 0.01
      %v1156 = vmul.f32 %v1116, 0.01
      %v1157 = vmul.f32 %v1125, 0.01
      %v1158 = vmul.f32 %v1134, 0.01
      %v1159 = vmul.f32 %v1143, 0.01
      %vm1160 = vcmp.gt.f32.partialorder %v936, 20.0
      %vm1161 = vcmp.gt.f32.partialorder %v937, 20.0
      %vm1162 = vcmp.gt.f32.partialorder %v938, 20.0
      %vm1163 = vcmp.gt.f32.partialorder %v939, 20.0
      %vm1164 = vcmp.gt.f32.partialorder %v940, 20.0
      %vm1165 = vcmp.gt.f32.partialorder %v941, 20.0
      %vm1166 = vcmp.gt.f32.partialorder %v942, 20.0
      %vm1167 = vcmp.gt.f32.partialorder %v943, 20.0
      %vm1168 = vcmp.gt.f32.partialorder %v944, 20.0
      %vm1169 = vcmp.gt.f32.partialorder %v945, 20.0
      %vm1170 = vcmp.gt.f32.partialorder %v946, 20.0
      %vm1171 = vcmp.gt.f32.partialorder %v947, 20.0
      %vm1172 = vcmp.gt.f32.partialorder %v948, 20.0
      %vm1173 = vcmp.gt.f32.partialorder %v949, 20.0
      %vm1174 = vcmp.gt.f32.partialorder %v950, 20.0
      %vm1175 = vcmp.gt.f32.partialorder %v951, 20.0
      %v1176 = vsel %vm1160, %v890, %v1144
      %v1177 = vsel %vm1161, %v892, %v1145
      %v1178 = vsel %vm1162, %v896, %v1146
      %v1179 = vsel %vm1163, %v898, %v1147
      %v1180 = vsel %vm1164, %v902, %v1148
      %v1181 = vsel %vm1165, %v904, %v1149
      %v1182 = vsel %vm1166, %v908, %v1150
      %v1183 = vsel %vm1167, %v910, %v1151
      %v1184 = vsel %vm1168, %v914, %v1152
      %v1185 = vsel %vm1169, %v916, %v1153
      %v1186 = vsel %vm1170, %v920, %v1154
      %v1187 = vsel %vm1171, %v922, %v1155
      %v1188 = vsel %vm1172, %v926, %v1156
      %v1189 = vsel %vm1173, %v928, %v1157
      %v1190 = vsel %vm1174, %v932, %v1158
      %v1191 = vsel %vm1175, %v934, %v1159
      %1193 = vset.pattern.permute.xlu0 0
      %1194 = vperm.xlu0 %1193, %v315
      %v1195 = vpop.permute.xlu0 %1194
      %v1198 = vsel %vm798, %v298, 0
      %1200 = vmatprep.subr.mxu0 %v1177
      %1201 = vmatpush1.msra.mxu0 %v1176
      %1202 = vmatprep.subr.mxu0 %v1179
      %1203 = vmatpush1.msra.mxu0 %v1178
      %1204 = vmatprep.subr.mxu0 %v1181
      %1205 = vmatpush1.msra.mxu0 %v1180
      %1206 = vmatprep.subr.mxu0 %v1183
      %1207 = vmatpush1.msra.mxu0 %v1182
      %1208 = vmatprep.subr.mxu0 %v1185
      %1209 = vmatpush1.msra.mxu0 %v1184
      %1210 = vmatprep.subr.mxu0 %v1187
      %1211 = vmatpush1.msra.mxu0 %v1186
      %1212 = vmatprep.subr.mxu0 %v1189
      %1213 = vmatpush1.msra.mxu0 %v1188
      %1214 = vmatprep.subr.mxu0 %v1191
      %1215 = vmatpush1.msra.mxu0 %v1190
      %1216 = vmatprep.subr.mxu0 0.0
      %1217 = vmatpush1.msra.mxu0 0.0
      %1218 = vmatprep.subr.mxu0 0.0
      %1219 = vmatpush1.msra.mxu0 0.0
      %1220 = vmatprep.subr.mxu0 0.0
      %1221 = vmatpush1.msra.mxu0 0.0
      %1222 = vmatprep.subr.mxu0 0.0
      %1223 = vmatpush1.msra.mxu0 0.0
      %1224 = vmatprep.subr.mxu0 0.0
      %1225 = vmatpush1.msra.mxu0 0.0
      %1226 = vmatprep.subr.mxu0 0.0
      %1227 = vmatpush1.msra.mxu0 0.0
      %1228 = vmatprep.subr.mxu0 0.0
      %1229 = vmatpush1.msra.mxu0 0.0
      %1230 = vmatprep.subr.mxu0 0.0
      %1231 = vmatpush1.msra.mxu0 0.0
      %1232 = vmatprep.subr.mxu0 0.0
      %1233 = vmatpush1.msra.mxu0 0.0
      %1234 = vmatprep.subr.mxu0 0.0
      %1235 = vmatpush1.msra.mxu0 0.0
      %1236 = vmatprep.subr.mxu0 0.0
      %1237 = vmatpush1.msra.mxu0 0.0
      %1238 = vmatprep.subr.mxu0 0.0
      %1239 = vmatpush1.msra.mxu0 0.0
      %1240 = vmatprep.subr.mxu0 0.0
      %1241 = vmatpush1.msra.mxu0 0.0
      %1242 = vmatprep.subr.mxu0 0.0
      %1243 = vmatpush1.msra.mxu0 0.0
      %1244 = vmatprep.subr.mxu0 0.0
      %1245 = vmatpush1.msra.mxu0 0.0
      %1246 = vmatprep.subr.mxu0 0.0
      %1247 = vmatpush1.msra.mxu0 0.0
      %1248 = vmatprep.subr.mxu0 0.0
      %1249 = vmatpush1.msra.mxu0 0.0
      %1250 = vmatprep.subr.mxu0 0.0
      %1251 = vmatpush1.msra.mxu0 0.0
      %1252 = vmatprep.subr.mxu0 0.0
      %1253 = vmatpush1.msra.mxu0 0.0
      %1254 = vmatprep.subr.mxu0 0.0
      %1255 = vmatpush1.msra.mxu0 0.0
      %1256 = vmatprep.subr.mxu0 0.0
      %1257 = vmatpush1.msra.mxu0 0.0
      %1258 = vmatprep.subr.mxu0 0.0
      %1259 = vmatpush1.msra.mxu0 0.0
      %1260 = vmatprep.subr.mxu0 0.0
      %1261 = vmatpush1.msra.mxu0 0.0
      %1262 = vmatprep.subr.mxu0 0.0
      %1263 = vmatpush1.msra.mxu0 0.0
      %1264 = vmatprep.mubr.f32.mxu0 0.0
      %1265 = vmatmul.mubr.f32.gmra.mrb[0].mxu0 %v1198
      %v1266 = vpop.f32.mrb[0].mxu0
      %v1267 = vadd.f32 %v1195, %v1266
      %v1268 = vpop.f32.mrb[0].mxu0
      %v1269 = vadd.f32 %v1195, %v1268
      %1270 = vdwg.mxu0
      %v1273 = vcombine.low %v1267, %v1269
      %1275 = vst [vmem:[%s280] sm:$0xff] %v1273
      %s1276 = smul.u32 2, %s18
      %p1277 = scmp.lt.s32.totalorder %s1276, 3
      %s1278 = scalar_select %p1277, %s1276, 3
      %s1279 = smul.addr %s1278, 4
      %s1280 = scalar_lea.vmem %s7, %s1279
      // Predicated region
      $region49: #{sphere_init_mlp_pallas.1} parent=47 // pred_check
        %p1281 = pneg %p188
      $region50: #{sphere_init_mlp_pallas.1} parent=47 // pred_check_branch
        %1283 = sbr.rel (%p1281) target = $region52
      $region51: #{sphere_init_mlp_pallas.1} parent=47 // pred_region
        %s1284 = smul.u32 2, %s18
      $region52: #{sphere_init_mlp_pallas.1} parent=47 // pred_fallthru
        _
    $region48: #{sphere_init_mlp_pallas.1} parent=5 // pred_fallthru
      _
    %p1285 = scmp.le.s32.totalorder 2, %s13
    // Predicated region
    $region53: #{sphere_init_mlp_pallas.1} parent=5 // pred_check
      %p1286 = pneg %p1285
    $region54: #{sphere_init_mlp_pallas.1} parent=5 // pred_check_branch
      %1288 = sbr.rel (%p1286) target = $region56
    $region55: #{sphere_init_mlp_pallas.1} parent=5 // pred_region
      %s1289 = ssub.s32 %s13, 2
      // Predicated region
      $region57: #{sphere_init_mlp_pallas.1} parent=55 // pred_check
        %p1290 = pneg %p194
      $region58: #{sphere_init_mlp_pallas.1} parent=55 // pred_check_branch
        %1292 = sbr.rel (%p1290) target = $region60
      $region59: #{sphere_init_mlp_pallas.1} parent=55 // pred_region
        %s1293 = smul.u32 2, %s19
        %p1294 = scmp.lt.s32.totalorder %s1293, 3
        %s1295 = scalar_select %p1294, %s1293, 3
        %s1296 = smul.addr %s1295, 4
        %s1297 = scalar_lea.vmem %s7, %s1296
      $region60: #{sphere_init_mlp_pallas.1} parent=55 // pred_fallthru
        _
    $region56: #{sphere_init_mlp_pallas.1} parent=5 // pred_fallthru
      _
  $region6: #{sphere_init_mlp_pallas.1} parent=0 // loop_footer
    %s17 = sadd.s32 1, %s13
  $region7: #{sphere_init_mlp_pallas.1} parent=0 // loop_footer_branch
    %12 = sbr.rel target = $region3
  $region8: #{sphere_init_mlp_pallas.1} parent=0 // loop_exit
    _

</llo_original>
